<compile_context>
chip_gen: v5e
topology: v5e:2x2
jax: 0.10.0
libtpu: 0.0.40
codegen_flags: <defaults>
</compile_context>

<pallas_src>
import functools

import jax
import jax.numpy as jnp
from jax.experimental import pallas as pl
from jax.experimental.pallas import tpu as pltpu

IMG_SIZE = 28
IN_DIM = IMG_SIZE * IMG_SIZE          # 784
K_PAD = 896                           # 7 * 128 (padded contraction dim)
HID_DIM = 128
OUT_DIM = 10
N_PAD = 128                           # lane-dense padded output width


def _round_up(x, m):
    return ((x + m - 1) // m) * m


def mlp_softmax_kernel(x_ref, w1_ref, b1_ref, w2_ref, b2_ref, o_ref):
    # ---- Linear(784->128) + ReLU : bf16 operands, f32 accumulate on MXU ----
    h = jnp.dot(x_ref[...], w1_ref[...],
                preferred_element_type=jnp.float32) + b1_ref[...]
    h = jnp.maximum(h, 0.0)

    # Dropout(0.2): identity in eval mode.

    # ---- Linear(128->128 padded) : bf16 operands, f32 accumulate ----
    logits = jnp.dot(h.astype(jnp.bfloat16), w2_ref[...],
                     preferred_element_type=jnp.float32) + b2_ref[...]
    # padded lanes carry bias = -1e30 -> exp() underflows to exactly 0

    # ---- Softmax over the (lane-dense) last axis, numerically stable ----
    m = jnp.max(logits, axis=-1, keepdims=True)
    e = jnp.exp(logits - m)
    denom = jnp.sum(e, axis=-1, keepdims=True)
    o_ref[...] = (e * pl.reciprocal(denom, approx=True)).astype(o_ref.dtype)


@functools.partial(jax.jit, static_argnames=("block_b",))
def mlp_forward(x, w1, b1, w2, b2, block_b=1024):
    B = x.shape[0]

    # Batch tile: at most `block_b` rows, at least a sublane-aligned tile.
    TB = min(block_b, _round_up(B, 8))
    Bp = _round_up(B, TB)
    grid = (Bp // TB,)

    # ---- Offline (wrapper-side) padding / dtype prep ----
    # x: pad batch to Bp, pad K 784 -> 896 with zeros, cast to bf16.
    xp = jnp.pad(x, ((0, Bp - B), (0, K_PAD - IN_DIM))).astype(jnp.bfloat16)
    # w1: pad K rows with zeros (matches zero-padded x columns), bf16.
    w1p = jnp.pad(w1, ((0, K_PAD - IN_DIM), (0, 0))).astype(jnp.bfloat16)
    b1p = jnp.reshape(b1, (1, HID_DIM)).astype(jnp.float32)
    # w2: pad output columns 10 -> 128 with zeros, bf16.
    w2p = jnp.pad(w2, ((0, 0), (0, N_PAD - OUT_DIM))).astype(jnp.bfloat16)
    # b2: padded columns get a huge negative bias so softmax ignores them.
    b2p = jnp.pad(jnp.reshape(b2, (1, OUT_DIM)),
                  ((0, 0), (0, N_PAD - OUT_DIM)),
                  constant_values=-1e30).astype(jnp.float32)

    cost = pl.CostEstimate(
        flops=2 * Bp * (K_PAD * HID_DIM + HID_DIM * N_PAD),
        transcendentals=Bp * N_PAD,
        bytes_accessed=(Bp * K_PAD * 2 + Bp * N_PAD * 4
                        + K_PAD * HID_DIM * 2 + HID_DIM * N_PAD * 2
                        + (HID_DIM + N_PAD) * 4),
    )

    out_padded = pl.pallas_call(
        mlp_softmax_kernel,
        out_shape=jax.ShapeDtypeStruct((Bp, N_PAD), jnp.float32),
        grid=grid,
        in_specs=[
            pl.BlockSpec((TB, K_PAD), lambda i: (i, 0)),        # x tile (streamed)
            pl.BlockSpec((K_PAD, HID_DIM), lambda i: (0, 0)),   # w1 (resident)
            pl.BlockSpec((1, HID_DIM), lambda i: (0, 0)),       # b1 (resident)
            pl.BlockSpec((HID_DIM, N_PAD), lambda i: (0, 0)),   # w2 (resident)
            pl.BlockSpec((1, N_PAD), lambda i: (0, 0)),         # b2 (resident)
        ],
        out_specs=pl.BlockSpec((TB, N_PAD), lambda i: (i, 0)),
        compiler_params=pltpu.CompilerParams(
            dimension_semantics=("parallel",),
            vmem_limit_bytes=32 * 1024 * 1024,
        ),
        cost_estimate=cost,
    )(xp, w1p, b1p, w2p, b2p)

    # Strip batch padding and the 118 zero-probability padded lanes.
    return out_padded[:B, :OUT_DIM]


def init_params(key):
    # Mimic PyTorch nn.Linear default init: U(-1/sqrt(fan_in), 1/sqrt(fan_in))
    k1, k2, k3, k4 = jax.random.split(key, 4)
    bound1 = 1.0 / jnp.sqrt(IN_DIM)
    bound2 = 1.0 / jnp.sqrt(HID_DIM)
    w1 = jax.random.uniform(k1, (IN_DIM, HID_DIM), jnp.float32, -bound1, bound1)
    b1 = jax.random.uniform(k2, (1, HID_DIM), jnp.float32, -bound1, bound1)
    w2 = jax.random.uniform(k3, (HID_DIM, OUT_DIM), jnp.float32, -bound2, bound2)
    b2 = jax.random.uniform(k4, (1, OUT_DIM), jnp.float32, -bound2, bound2)
    return w1, b1, w2, b2


if __name__ == "__main__":
    key = jax.random.PRNGKey(0)
    k_x, k_p = jax.random.split(key)

    B = 2
    x = jax.random.normal(k_x, (B, IN_DIM), jnp.float32)
    w1, b1, w2, b2 = init_params(k_p)

    out = mlp_forward(x, w1, b1, w2, b2)
    out = jax.block_until_ready(out)

    # sanity: shape, softmax rows sum to ~1, and agreement with pure-JAX ref
    assert out.shape == (B, OUT_DIM)
    row_sums = jnp.sum(out, axis=-1)
    assert bool(jnp.all(jnp.abs(row_sums - 1.0) < 1e-2))

    ref = jax.nn.softmax(jnp.maximum(x @ w1 + b1, 0.0) @ w2 + b2, axis=-1)
    assert bool(jnp.all(jnp.abs(out - ref) < 5e-2))  # bf16 matmul + approx recip

    print("KERNEL_OK")
</pallas_src>

<mosaic_0001>
module attributes {stable_mosaic.version = 11 : i64} {
  func.func @mlp_softmax_kernel(%arg0: i32, %arg1: memref<8x896xbf16, #tpu.memory_space<vmem>>, %arg2: memref<896x128xbf16, #tpu.memory_space<vmem>>, %arg3: memref<1x128xf32, #tpu.memory_space<vmem>>, %arg4: memref<128x128xbf16, #tpu.memory_space<vmem>>, %arg5: memref<1x128xf32, #tpu.memory_space<vmem>>, %arg6: memref<8x128xf32, #tpu.memory_space<vmem>>) attributes {dimension_semantics = [#tpu.dimension_semantics<parallel>], iteration_bounds = array<i64: 1>, scalar_prefetch = 0 : i64, scratch_operands = 0 : i64, tpu.core_type = #tpu.core_type<tc>, window_params = [{transform_indices = @transform_0, window_bounds = array<i64: 8, 896>}, {pipeline_mode = #tpu.pipeline_mode<synchronous>, transform_indices = @transform_1, window_bounds = array<i64: 896, 128>}, {pipeline_mode = #tpu.pipeline_mode<synchronous>, transform_indices = @transform_2, window_bounds = array<i64: 1, 128>}, {pipeline_mode = #tpu.pipeline_mode<synchronous>, transform_indices = @transform_3, window_bounds = array<i64: 128, 128>}, {pipeline_mode = #tpu.pipeline_mode<synchronous>, transform_indices = @transform_4, window_bounds = array<i64: 1, 128>}, {transform_indices = @transform_5, window_bounds = array<i64: 8, 128>}]} {
    %c0 = arith.constant 0 : index
    %c0_0 = arith.constant 0 : index
    %0 = vector.load %arg1[%c0, %c0_0] : memref<8x896xbf16, #tpu.memory_space<vmem>>, vector<8x896xbf16>
    %c0_1 = arith.constant 0 : index
    %c0_2 = arith.constant 0 : index
    %1 = vector.load %arg2[%c0_1, %c0_2] : memref<896x128xbf16, #tpu.memory_space<vmem>>, vector<896x128xbf16>
    %cst = arith.constant dense<0.000000e+00> : vector<8x128xf32>
    %2 = tpu.matmul %0, %1, %cst {dimension_numbers = #tpu.dot_dimension_numbers<[1], [0], [0], [1], [0, 0, 1, 1], [], []>} : vector<8x896xbf16>, vector<896x128xbf16>, vector<8x128xf32> -> vector<8x128xf32>
    %c0_3 = arith.constant 0 : index
    %c0_4 = arith.constant 0 : index
    %3 = vector.load %arg3[%c0_3, %c0_4] : memref<1x128xf32, #tpu.memory_space<vmem>>, vector<1x128xf32>
    %4 = vector.broadcast %3 : vector<1x128xf32> to vector<8x128xf32>
    %5 = arith.addf %2, %4 : vector<8x128xf32>
    %cst_5 = arith.constant 0.000000e+00 : f32
    %6 = vector.broadcast %cst_5 : f32 to vector<8x128xf32>
    %7 = arith.maximumf %5, %6 : vector<8x128xf32>
    %8 = arith.truncf %7 : vector<8x128xf32> to vector<8x128xbf16>
    %c0_6 = arith.constant 0 : index
    %c0_7 = arith.constant 0 : index
    %9 = vector.load %arg4[%c0_6, %c0_7] : memref<128x128xbf16, #tpu.memory_space<vmem>>, vector<128x128xbf16>
    %cst_8 = arith.constant dense<0.000000e+00> : vector<8x128xf32>
    %10 = tpu.matmul %8, %9, %cst_8 {dimension_numbers = #tpu.dot_dimension_numbers<[1], [0], [0], [1], [0, 0, 1, 1], [], []>} : vector<8x128xbf16>, vector<128x128xbf16>, vector<8x128xf32> -> vector<8x128xf32>
    %c0_9 = arith.constant 0 : index
    %c0_10 = arith.constant 0 : index
    %11 = vector.load %arg5[%c0_9, %c0_10] : memref<1x128xf32, #tpu.memory_space<vmem>>, vector<1x128xf32>
    %12 = vector.broadcast %11 : vector<1x128xf32> to vector<8x128xf32>
    %13 = arith.addf %10, %12 : vector<8x128xf32>
    %cst_11 = arith.constant dense<0xFF800000> : vector<8xf32>
    %14 = vector.multi_reduction <maximumf>, %13, %cst_11 [1] : vector<8x128xf32> to vector<8xf32>
    %15 = vector.shape_cast %14 : vector<8xf32> to vector<8x1xf32>
    %16 = vector.broadcast %15 : vector<8x1xf32> to vector<8x128xf32>
    %17 = arith.subf %13, %16 : vector<8x128xf32>
    %18 = math.exp %17 : vector<8x128xf32>
    %cst_12 = arith.constant dense<0.000000e+00> : vector<8xf32>
    %19 = vector.multi_reduction <add>, %18, %cst_12 [1] : vector<8x128xf32> to vector<8xf32>
    %20 = vector.shape_cast %19 : vector<8xf32> to vector<8x1xf32>
    %21 = tpu.reciprocal %20 {approx = true} : vector<8x1xf32> -> vector<8x1xf32>
    %22 = vector.broadcast %21 : vector<8x1xf32> to vector<8x128xf32>
    %23 = arith.mulf %18, %22 : vector<8x128xf32>
    %c0_13 = arith.constant 0 : index
    %c0_14 = arith.constant 0 : index
    %24 = vector.load %arg6[%c0_13, %c0_14] : memref<8x128xf32, #tpu.memory_space<vmem>>, vector<8x128xf32>
    tpu.vector_store %arg6[%c0_13, %c0_14], %23 {strides = array<i32>} : memref<8x128xf32, #tpu.memory_space<vmem>>, vector<8x128xf32>,
    return
  }
  func.func @transform_0(%arg0: i32) -> (i32, i32) {
    %c0_i32 = arith.constant 0 : i32
    %c0_i32_0 = arith.constant 0 : i32
    return %arg0, %c0_i32 : i32, i32
  }
  func.func @transform_1(%arg0: i32) -> (i32, i32) {
    %c0_i32 = arith.constant 0 : i32
    %c0_i32_0 = arith.constant 0 : i32
    %c0_i32_1 = arith.constant 0 : i32
    return %c0_i32, %c0_i32_0 : i32, i32
  }
  func.func @transform_2(%arg0: i32) -> (i32, i32) {
    %c0_i32 = arith.constant 0 : i32
    %c0_i32_0 = arith.constant 0 : i32
    %c0_i32_1 = arith.constant 0 : i32
    return %c0_i32, %c0_i32_0 : i32, i32
  }
  func.func @transform_3(%arg0: i32) -> (i32, i32) {
    %c0_i32 = arith.constant 0 : i32
    %c0_i32_0 = arith.constant 0 : i32
    %c0_i32_1 = arith.constant 0 : i32
    return %c0_i32, %c0_i32_0 : i32, i32
  }
  func.func @transform_4(%arg0: i32) -> (i32, i32) {
    %c0_i32 = arith.constant 0 : i32
    %c0_i32_0 = arith.constant 0 : i32
    %c0_i32_1 = arith.constant 0 : i32
    return %c0_i32, %c0_i32_0 : i32, i32
  }
  func.func @transform_5(%arg0: i32) -> (i32, i32) {
    %c0_i32 = arith.constant 0 : i32
    %c0_i32_0 = arith.constant 0 : i32
    return %arg0, %c0_i32 : i32, i32
  }
}

</mosaic_0001>

<llo_original>
// kernel: mlp_forward.1
$region0: #{mlp_forward.1}
  #allocation0 [shape = 'u32[]', space=smem, size = 0x4, offset = 0x4, fixed_abs, tag = 'smem constant byte address 0x4 - core index']
  #allocation1 [shape = 'u32[72,128]{1,0:T(1,128)}', space=vmem, size = 0x9000, scoped, tag = 'internal scratch']
  %s0 = inlined_call_operand.vmem [shape: bf16[8,896], index: 0, kind: input, shape index: {}]
  %s1 = inlined_call_operand.vmem [shape: bf16[896,128], index: 1, kind: input, shape index: {}]
  %s2 = inlined_call_operand.vmem [shape: f32[1,128], index: 2, kind: input, shape index: {}]
  %s3 = inlined_call_operand.vmem [shape: bf16[128,128], index: 3, kind: input, shape index: {}]
  %s4 = inlined_call_operand.vmem [shape: f32[1,128], index: 4, kind: input, shape index: {}]
  %s5 = inlined_call_operand.vmem [shape: f32[8,128], index: 5, kind: output, shape index: {}]
  %s6 = sld [smem:[#allocation0]]
  $region30: #{mlp_forward.1} parent=0
    _
  %s8 = ssub.s32 1, %s6
  %s9 = scalar_select 0, %s8, %s6
  // Predicated region
  $region2: #{mlp_forward.1} parent=0 // pred_check
    _
  $region3: #{mlp_forward.1} parent=0 // pred_check_branch
    %11 = sbr.rel (0) target = $region5
  $region4: #{mlp_forward.1} parent=0 // pred_region
    _
  $region5: #{mlp_forward.1} parent=0 // pred_fallthru
    _
  // Predicated region
  $region6: #{mlp_forward.1} parent=0 // pred_check
    _
  $region7: #{mlp_forward.1} parent=0 // pred_check_branch
    %13 = sbr.rel (0) target = $region9
  $region8: #{mlp_forward.1} parent=0 // pred_region
    _
  $region9: #{mlp_forward.1} parent=0 // pred_fallthru
    _
  // Predicated region
  $region10: #{mlp_forward.1} parent=0 // pred_check
    _
  $region11: #{mlp_forward.1} parent=0 // pred_check_branch
    %15 = sbr.rel (0) target = $region13
  $region12: #{mlp_forward.1} parent=0 // pred_region
    _
  $region13: #{mlp_forward.1} parent=0 // pred_fallthru
    _
  // Predicated region
  $region14: #{mlp_forward.1} parent=0 // pred_check
    _
  $region15: #{mlp_forward.1} parent=0 // pred_check_branch
    %17 = sbr.rel (0) target = $region17
  $region16: #{mlp_forward.1} parent=0 // pred_region
    _
  $region17: #{mlp_forward.1} parent=0 // pred_fallthru
    _
  // Predicated region
  $region18: #{mlp_forward.1} parent=0 // pred_check
    _
  $region19: #{mlp_forward.1} parent=0 // pred_check_branch
    %19 = sbr.rel (0) target = $region21
  $region20: #{mlp_forward.1} parent=0 // pred_region
    _
  $region21: #{mlp_forward.1} parent=0 // pred_fallthru
    _
  %v20 = vld [vmem:[%s0] sm:$0xff]
  %v21 = vld [vmem:[%s0 + $0x8] sm:$0xff]
  %v22 = vld [vmem:[%s0 + $0x10] sm:$0xff]
  %v23 = vld [vmem:[%s0 + $0x18] sm:$0xf]
  %v24 = vld [vmem:[%s1] sm:$0xf]
  %v25 = vld [vmem:[%s1 + $0x4] sm:$0xf]
  %v26 = vld [vmem:[%s1 + $0x8] sm:$0xf]
  %v27 = vld [vmem:[%s1 + $0xc] sm:$0xf]
  %v28 = vld [vmem:[%s1 + $0x10] sm:$0xf]
  %v29 = vld [vmem:[%s1 + $0x14] sm:$0xf]
  %v30 = vld [vmem:[%s1 + $0x18] sm:$0xf]
  %v31 = vld [vmem:[%s1 + $0x1c] sm:$0xf]
  %v32 = vld [vmem:[%s1 + $0x20] sm:$0xf]
  %v33 = vld [vmem:[%s1 + $0x24] sm:$0xf]
  %v34 = vld [vmem:[%s1 + $0x28] sm:$0xf]
  %v35 = vld [vmem:[%s1 + $0x2c] sm:$0xf]
  %v36 = vld [vmem:[%s1 + $0x30] sm:$0xf]
  %v37 = vld [vmem:[%s1 + $0x34] sm:$0xf]
  %v38 = vld [vmem:[%s1 + $0x38] sm:$0xf]
  %v39 = vld [vmem:[%s1 + $0x3c] sm:$0xf]
  %v40 = vld [vmem:[%s1 + $0x40] sm:$0xf]
  %v41 = vld [vmem:[%s1 + $0x44] sm:$0xf]
  %v42 = vld [vmem:[%s1 + $0x48] sm:$0xf]
  %v43 = vld [vmem:[%s1 + $0x4c] sm:$0xf]
  %v44 = vld [vmem:[%s1 + $0x50] sm:$0xf]
  %v45 = vld [vmem:[%s1 + $0x54] sm:$0xf]
  %v46 = vld [vmem:[%s1 + $0x58] sm:$0xf]
  %v47 = vld [vmem:[%s1 + $0x5c] sm:$0xf]
  %v48 = vld [vmem:[%s1 + $0x60] sm:$0xf]
  %v49 = vld [vmem:[%s1 + $0x64] sm:$0xf]
  %v50 = vld [vmem:[%s1 + $0x68] sm:$0xf]
  %v51 = vld [vmem:[%s1 + $0x6c] sm:$0xf]
  %v52 = vld [vmem:[%s1 + $0x70] sm:$0xf]
  %v53 = vld [vmem:[%s1 + $0x74] sm:$0xf]
  %v54 = vld [vmem:[%s1 + $0x78] sm:$0xf]
  %v55 = vld [vmem:[%s1 + $0x7c] sm:$0xf]
  %v56 = vld [vmem:[%s1 + $0x80] sm:$0xf]
  %v57 = vld [vmem:[%s1 + $0x84] sm:$0xf]
  %v58 = vld [vmem:[%s1 + $0x88] sm:$0xf]
  %v59 = vld [vmem:[%s1 + $0x8c] sm:$0xf]
  %v60 = vld [vmem:[%s1 + $0x90] sm:$0xf]
  %v61 = vld [vmem:[%s1 + $0x94] sm:$0xf]
  %v62 = vld [vmem:[%s1 + $0x98] sm:$0xf]
  %v63 = vld [vmem:[%s1 + $0x9c] sm:$0xf]
  %v64 = vld [vmem:[%s1 + $0xa0] sm:$0xf]
  %v65 = vld [vmem:[%s1 + $0xa4] sm:$0xf]
  %v66 = vld [vmem:[%s1 + $0xa8] sm:$0xf]
  %v67 = vld [vmem:[%s1 + $0xac] sm:$0xf]
  %v68 = vld [vmem:[%s1 + $0xb0] sm:$0xf]
  %v69 = vld [vmem:[%s1 + $0xb4] sm:$0xf]
  %v70 = vld [vmem:[%s1 + $0xb8] sm:$0xf]
  %v71 = vld [vmem:[%s1 + $0xbc] sm:$0xf]
  %v72 = vld [vmem:[%s1 + $0xc0] sm:$0xf]
  %v73 = vld [vmem:[%s1 + $0xc4] sm:$0xf]
  %v74 = vld [vmem:[%s1 + $0xc8] sm:$0xf]
  %v75 = vld [vmem:[%s1 + $0xcc] sm:$0xf]
  %v76 = vld [vmem:[%s1 + $0xd0] sm:$0xf]
  %v77 = vld [vmem:[%s1 + $0xd4] sm:$0xf]
  %v78 = vld [vmem:[%s1 + $0xd8] sm:$0xf]
  %v79 = vld [vmem:[%s1 + $0xdc] sm:$0xf]
  %v80 = vld [vmem:[%s1 + $0xe0] sm:$0xf]
  %v81 = vld [vmem:[%s1 + $0xe4] sm:$0xf]
  %v82 = vld [vmem:[%s1 + $0xe8] sm:$0xf]
  %v83 = vld [vmem:[%s1 + $0xec] sm:$0xf]
  %v84 = vld [vmem:[%s1 + $0xf0] sm:$0xf]
  %v85 = vld [vmem:[%s1 + $0xf4] sm:$0xf]
  %v86 = vld [vmem:[%s1 + $0xf8] sm:$0xf]
  %v87 = vld [vmem:[%s1 + $0xfc] sm:$0xf]
  %v88 = vld [vmem:[%s1 + $0x100] sm:$0xf]
  %v89 = vld [vmem:[%s1 + $0x104] sm:$0xf]
  %v90 = vld [vmem:[%s1 + $0x108] sm:$0xf]
  %v91 = vld [vmem:[%s1 + $0x10c] sm:$0xf]
  %v92 = vld [vmem:[%s1 + $0x110] sm:$0xf]
  %v93 = vld [vmem:[%s1 + $0x114] sm:$0xf]
  %v94 = vld [vmem:[%s1 + $0x118] sm:$0xf]
  %v95 = vld [vmem:[%s1 + $0x11c] sm:$0xf]
  %v96 = vld [vmem:[%s1 + $0x120] sm:$0xf]
  %v97 = vld [vmem:[%s1 + $0x124] sm:$0xf]
  %v98 = vld [vmem:[%s1 + $0x128] sm:$0xf]
  %v99 = vld [vmem:[%s1 + $0x12c] sm:$0xf]
  %v100 = vld [vmem:[%s1 + $0x130] sm:$0xf]
  %v101 = vld [vmem:[%s1 + $0x134] sm:$0xf]
  %v102 = vld [vmem:[%s1 + $0x138] sm:$0xf]
  %v103 = vld [vmem:[%s1 + $0x13c] sm:$0xf]
  %v104 = vld [vmem:[%s1 + $0x140] sm:$0xf]
  %v105 = vld [vmem:[%s1 + $0x144] sm:$0xf]
  %v106 = vld [vmem:[%s1 + $0x148] sm:$0xf]
  %v107 = vld [vmem:[%s1 + $0x14c] sm:$0xf]
  %v108 = vld [vmem:[%s1 + $0x150] sm:$0xf]
  %v109 = vld [vmem:[%s1 + $0x154] sm:$0xf]
  %v110 = vld [vmem:[%s1 + $0x158] sm:$0xf]
  %v111 = vld [vmem:[%s1 + $0x15c] sm:$0xf]
  %v112 = vld [vmem:[%s1 + $0x160] sm:$0xf]
  %v113 = vld [vmem:[%s1 + $0x164] sm:$0xf]
  %v114 = vld [vmem:[%s1 + $0x168] sm:$0xf]
  %v115 = vld [vmem:[%s1 + $0x16c] sm:$0xf]
  %v116 = vld [vmem:[%s1 + $0x170] sm:$0xf]
  %v117 = vld [vmem:[%s1 + $0x174] sm:$0xf]
  %v118 = vld [vmem:[%s1 + $0x178] sm:$0xf]
  %v119 = vld [vmem:[%s1 + $0x17c] sm:$0xf]
  %v120 = vld [vmem:[%s1 + $0x180] sm:$0xf]
  %v121 = vld [vmem:[%s1 + $0x184] sm:$0xf]
  %v122 = vld [vmem:[%s1 + $0x188] sm:$0xf]
  %v123 = vld [vmem:[%s1 + $0x18c] sm:$0xf]
  %v124 = vld [vmem:[%s1 + $0x190] sm:$0xf]
  %v125 = vld [vmem:[%s1 + $0x194] sm:$0xf]
  %v126 = vld [vmem:[%s1 + $0x198] sm:$0xf]
  %v127 = vld [vmem:[%s1 + $0x19c] sm:$0xf]
  %v128 = vld [vmem:[%s1 + $0x1a0] sm:$0xf]
  %v129 = vld [vmem:[%s1 + $0x1a4] sm:$0xf]
  %v130 = vld [vmem:[%s1 + $0x1a8] sm:$0xf]
  %v131 = vld [vmem:[%s1 + $0x1ac] sm:$0xf]
  %v132 = vld [vmem:[%s1 + $0x1b0] sm:$0xf]
  %v133 = vld [vmem:[%s1 + $0x1b4] sm:$0xf]
  %v134 = vld [vmem:[%s1 + $0x1b8] sm:$0xf]
  %v135 = vld [vmem:[%s1 + $0x1bc] sm:$0xf]
  %v136 = vld [vmem:[%s2] sm:$0x1]
  %v138 = vperm.slane %v136, 0
  %v144 = vunpack.c.l.b16 %v20
  %v145 = vunpack.c.h.b16 %v20
  %v146 = vunpack.c.l.b16 %v21
  %v147 = vunpack.c.h.b16 %v21
  %v148 = vunpack.c.l.b16 %v22
  %v149 = vunpack.c.h.b16 %v22
  %v150 = vunpack.c.l.b16 %v23
  %v151 = vpack.c.b16 %v144, %v144
  %v152 = vpack.c.b16 %v145, %v145
  %v153 = vpack.c.b16 %v146, %v146
  %v154 = vpack.c.b16 %v147, %v147
  %v155 = vpack.c.b16 %v148, %v148
  %v156 = vpack.c.b16 %v149, %v149
  %v157 = vpack.c.b16 %v150, %v150
  %v277 = vunpack.c.l.b16 %v24
  %v278 = vunpack.c.l.b16 %v25
  %v279 = vunpack.c.l.b16 %v26
  %v280 = vunpack.c.l.b16 %v27
  %v281 = vunpack.c.l.b16 %v28
  %v282 = vunpack.c.l.b16 %v29
  %v283 = vunpack.c.l.b16 %v30
  %v284 = vunpack.c.l.b16 %v31
  %v285 = vunpack.c.l.b16 %v32
  %v286 = vunpack.c.l.b16 %v33
  %v287 = vunpack.c.l.b16 %v34
  %v288 = vunpack.c.l.b16 %v35
  %v289 = vunpack.c.l.b16 %v36
  %v290 = vunpack.c.l.b16 %v37
  %v291 = vunpack.c.l.b16 %v38
  %v292 = vunpack.c.l.b16 %v39
  %v293 = vunpack.c.l.b16 %v40
  %v294 = vunpack.c.l.b16 %v41
  %v295 = vunpack.c.l.b16 %v42
  %v296 = vunpack.c.l.b16 %v43
  %v297 = vunpack.c.l.b16 %v44
  %v298 = vunpack.c.l.b16 %v45
  %v299 = vunpack.c.l.b16 %v46
  %v300 = vunpack.c.l.b16 %v47
  %v301 = vunpack.c.l.b16 %v48
  %v302 = vunpack.c.l.b16 %v49
  %v303 = vunpack.c.l.b16 %v50
  %v304 = vunpack.c.l.b16 %v51
  %v305 = vunpack.c.l.b16 %v52
  %v306 = vunpack.c.l.b16 %v53
  %v307 = vunpack.c.l.b16 %v54
  %v308 = vunpack.c.l.b16 %v55
  %v309 = vunpack.c.l.b16 %v56
  %v310 = vunpack.c.l.b16 %v57
  %v311 = vunpack.c.l.b16 %v58
  %v312 = vunpack.c.l.b16 %v59
  %v313 = vunpack.c.l.b16 %v60
  %v314 = vunpack.c.l.b16 %v61
  %v315 = vunpack.c.l.b16 %v62
  %v316 = vunpack.c.l.b16 %v63
  %v317 = vunpack.c.l.b16 %v64
  %v318 = vunpack.c.l.b16 %v65
  %v319 = vunpack.c.l.b16 %v66
  %v320 = vunpack.c.l.b16 %v67
  %v321 = vunpack.c.l.b16 %v68
  %v322 = vunpack.c.l.b16 %v69
  %v323 = vunpack.c.l.b16 %v70
  %v324 = vunpack.c.l.b16 %v71
  %v325 = vunpack.c.l.b16 %v72
  %v326 = vunpack.c.l.b16 %v73
  %v327 = vunpack.c.l.b16 %v74
  %v328 = vunpack.c.l.b16 %v75
  %v329 = vunpack.c.l.b16 %v76
  %v330 = vunpack.c.l.b16 %v77
  %v331 = vunpack.c.l.b16 %v78
  %v332 = vunpack.c.l.b16 %v79
  %v333 = vunpack.c.l.b16 %v80
  %v334 = vunpack.c.l.b16 %v81
  %v335 = vunpack.c.l.b16 %v82
  %v336 = vunpack.c.l.b16 %v83
  %v337 = vunpack.c.l.b16 %v84
  %v338 = vunpack.c.l.b16 %v85
  %v339 = vunpack.c.l.b16 %v86
  %v340 = vunpack.c.l.b16 %v87
  %v341 = vunpack.c.l.b16 %v88
  %v342 = vunpack.c.l.b16 %v89
  %v343 = vunpack.c.l.b16 %v90
  %v344 = vunpack.c.l.b16 %v91
  %v345 = vunpack.c.l.b16 %v92
  %v346 = vunpack.c.l.b16 %v93
  %v347 = vunpack.c.l.b16 %v94
  %v348 = vunpack.c.l.b16 %v95
  %v349 = vunpack.c.l.b16 %v96
  %v350 = vunpack.c.l.b16 %v97
  %v351 = vunpack.c.l.b16 %v98
  %v352 = vunpack.c.l.b16 %v99
  %v353 = vunpack.c.l.b16 %v100
  %v354 = vunpack.c.l.b16 %v101
  %v355 = vunpack.c.l.b16 %v102
  %v356 = vunpack.c.l.b16 %v103
  %v357 = vunpack.c.l.b16 %v104
  %v358 = vunpack.c.l.b16 %v105
  %v359 = vunpack.c.l.b16 %v106
  %v360 = vunpack.c.l.b16 %v107
  %v361 = vunpack.c.l.b16 %v108
  %v362 = vunpack.c.l.b16 %v109
  %v363 = vunpack.c.l.b16 %v110
  %v364 = vunpack.c.l.b16 %v111
  %v365 = vunpack.c.l.b16 %v112
  %v366 = vunpack.c.l.b16 %v113
  %v367 = vunpack.c.l.b16 %v114
  %v368 = vunpack.c.l.b16 %v115
  %v369 = vunpack.c.l.b16 %v116
  %v370 = vunpack.c.l.b16 %v117
  %v371 = vunpack.c.l.b16 %v118
  %v372 = vunpack.c.l.b16 %v119
  %v373 = vunpack.c.l.b16 %v120
  %v374 = vunpack.c.l.b16 %v121
  %v375 = vunpack.c.l.b16 %v122
  %v376 = vunpack.c.l.b16 %v123
  %v377 = vunpack.c.l.b16 %v124
  %v378 = vunpack.c.l.b16 %v125
  %v379 = vunpack.c.l.b16 %v126
  %v380 = vunpack.c.l.b16 %v127
  %v381 = vunpack.c.l.b16 %v128
  %v382 = vunpack.c.l.b16 %v129
  %v383 = vunpack.c.l.b16 %v130
  %v384 = vunpack.c.l.b16 %v131
  %v385 = vunpack.c.l.b16 %v132
  %v386 = vunpack.c.l.b16 %v133
  %v387 = vunpack.c.l.b16 %v134
  %v388 = vunpack.c.l.b16 %v135
  %v389 = vpack.c.b16 %v278, %v277
  %v390 = vpack.c.b16 %v280, %v279
  %v391 = vpack.c.b16 %v282, %v281
  %v392 = vpack.c.b16 %v284, %v283
  %v393 = vpack.c.b16 %v286, %v285
  %v394 = vpack.c.b16 %v288, %v287
  %v395 = vpack.c.b16 %v290, %v289
  %v396 = vpack.c.b16 %v292, %v291
  %v397 = vpack.c.b16 %v294, %v293
  %v398 = vpack.c.b16 %v296, %v295
  %v399 = vpack.c.b16 %v298, %v297
  %v400 = vpack.c.b16 %v300, %v299
  %v401 = vpack.c.b16 %v302, %v301
  %v402 = vpack.c.b16 %v304, %v303
  %v403 = vpack.c.b16 %v306, %v305
  %v404 = vpack.c.b16 %v308, %v307
  %v405 = vpack.c.b16 %v310, %v309
  %v406 = vpack.c.b16 %v312, %v311
  %v407 = vpack.c.b16 %v314, %v313
  %v408 = vpack.c.b16 %v316, %v315
  %v409 = vpack.c.b16 %v318, %v317
  %v410 = vpack.c.b16 %v320, %v319
  %v411 = vpack.c.b16 %v322, %v321
  %v412 = vpack.c.b16 %v324, %v323
  %v413 = vpack.c.b16 %v326, %v325
  %v414 = vpack.c.b16 %v328, %v327
  %v415 = vpack.c.b16 %v330, %v329
  %v416 = vpack.c.b16 %v332, %v331
  %v417 = vpack.c.b16 %v334, %v333
  %v418 = vpack.c.b16 %v336, %v335
  %v419 = vpack.c.b16 %v338, %v337
  %v420 = vpack.c.b16 %v340, %v339
  %v421 = vpack.c.b16 %v342, %v341
  %v422 = vpack.c.b16 %v344, %v343
  %v423 = vpack.c.b16 %v346, %v345
  %v424 = vpack.c.b16 %v348, %v347
  %v425 = vpack.c.b16 %v350, %v349
  %v426 = vpack.c.b16 %v352, %v351
  %v427 = vpack.c.b16 %v354, %v353
  %v428 = vpack.c.b16 %v356, %v355
  %v429 = vpack.c.b16 %v358, %v357
  %v430 = vpack.c.b16 %v360, %v359
  %v431 = vpack.c.b16 %v362, %v361
  %v432 = vpack.c.b16 %v364, %v363
  %v433 = vpack.c.b16 %v366, %v365
  %v434 = vpack.c.b16 %v368, %v367
  %v435 = vpack.c.b16 %v370, %v369
  %v436 = vpack.c.b16 %v372, %v371
  %v437 = vpack.c.b16 %v374, %v373
  %v438 = vpack.c.b16 %v376, %v375
  %v439 = vpack.c.b16 %v378, %v377
  %v440 = vpack.c.b16 %v380, %v379
  %v441 = vpack.c.b16 %v382, %v381
  %v442 = vpack.c.b16 %v384, %v383
  %v443 = vpack.c.b16 %v386, %v385
  %v444 = vpack.c.b16 %v388, %v387
  %501 = vmatpush.bf16.msra.mxu0 %v396
  %502 = vmatpush.bf16.msra.mxu0 %v395
  %503 = vmatpush.bf16.msra.mxu0 %v394
  %504 = vmatpush.bf16.msra.mxu0 %v393
  %505 = vmatpush.bf16.msra.mxu0 %v392
  %506 = vmatpush.bf16.msra.mxu0 %v391
  %507 = vmatpush.bf16.msra.mxu0 %v390
  %508 = vmatpush.bf16.msra.mxu0 %v389
  %509 = vmatmul.bf16.gmra.mxu0 %v151
  %v510 = vpop.f32.mrf.mxu0
  %v511 = vadd.f32 %v138, %v510
  %v512 = vpop.f32.mrf.mxu0
  %513 = vdwg.mxu0
  %514 = vmatpush.bf16.msra.mxu0 %v404
  %515 = vmatpush.bf16.msra.mxu0 %v403
  %516 = vmatpush.bf16.msra.mxu0 %v402
  %517 = vmatpush.bf16.msra.mxu0 %v401
  %518 = vmatpush.bf16.msra.mxu0 %v400
  %519 = vmatpush.bf16.msra.mxu0 %v399
  %520 = vmatpush.bf16.msra.mxu0 %v398
  %521 = vmatpush.bf16.msra.mxu0 %v397
  %522 = vmatmul.bf16.gmra.mxu0 %v152
  %v523 = vpop.f32.mrf.mxu0
  %v524 = vadd.f32 %v511, %v523
  %v525 = vpop.f32.mrf.mxu0
  %526 = vdwg.mxu0
  %527 = vmatpush.bf16.msra.mxu0 %v412
  %528 = vmatpush.bf16.msra.mxu0 %v411
  %529 = vmatpush.bf16.msra.mxu0 %v410
  %530 = vmatpush.bf16.msra.mxu0 %v409
  %531 = vmatpush.bf16.msra.mxu0 %v408
  %532 = vmatpush.bf16.msra.mxu0 %v407
  %533 = vmatpush.bf16.msra.mxu0 %v406
  %534 = vmatpush.bf16.msra.mxu0 %v405
  %535 = vmatmul.bf16.gmra.mxu0 %v153
  %v536 = vpop.f32.mrf.mxu0
  %v537 = vadd.f32 %v524, %v536
  %v538 = vpop.f32.mrf.mxu0
  %539 = vdwg.mxu0
  %540 = vmatpush.bf16.msra.mxu0 %v420
  %541 = vmatpush.bf16.msra.mxu0 %v419
  %542 = vmatpush.bf16.msra.mxu0 %v418
  %543 = vmatpush.bf16.msra.mxu0 %v417
  %544 = vmatpush.bf16.msra.mxu0 %v416
  %545 = vmatpush.bf16.msra.mxu0 %v415
  %546 = vmatpush.bf16.msra.mxu0 %v414
  %547 = vmatpush.bf16.msra.mxu0 %v413
  %548 = vmatmul.bf16.gmra.mxu0 %v154
  %v549 = vpop.f32.mrf.mxu0
  %v550 = vadd.f32 %v537, %v549
  %v551 = vpop.f32.mrf.mxu0
  %552 = vdwg.mxu0
  %553 = vmatpush.bf16.msra.mxu0 %v428
  %554 = vmatpush.bf16.msra.mxu0 %v427
  %555 = vmatpush.bf16.msra.mxu0 %v426
  %556 = vmatpush.bf16.msra.mxu0 %v425
  %557 = vmatpush.bf16.msra.mxu0 %v424
  %558 = vmatpush.bf16.msra.mxu0 %v423
  %559 = vmatpush.bf16.msra.mxu0 %v422
  %560 = vmatpush.bf16.msra.mxu0 %v421
  %561 = vmatmul.bf16.gmra.mxu0 %v155
  %v562 = vpop.f32.mrf.mxu0
  %v563 = vadd.f32 %v550, %v562
  %v564 = vpop.f32.mrf.mxu0
  %565 = vdwg.mxu0
  %566 = vmatpush.bf16.msra.mxu0 %v436
  %567 = vmatpush.bf16.msra.mxu0 %v435
  %568 = vmatpush.bf16.msra.mxu0 %v434
  %569 = vmatpush.bf16.msra.mxu0 %v433
  %570 = vmatpush.bf16.msra.mxu0 %v432
  %571 = vmatpush.bf16.msra.mxu0 %v431
  %572 = vmatpush.bf16.msra.mxu0 %v430
  %573 = vmatpush.bf16.msra.mxu0 %v429
  %574 = vmatmul.bf16.gmra.mxu0 %v156
  %v575 = vpop.f32.mrf.mxu0
  %v576 = vadd.f32 %v563, %v575
  %v577 = vpop.f32.mrf.mxu0
  %578 = vdwg.mxu0
  %579 = vmatpush.bf16.msra.mxu0 %v444
  %580 = vmatpush.bf16.msra.mxu0 %v443
  %581 = vmatpush.bf16.msra.mxu0 %v442
  %582 = vmatpush.bf16.msra.mxu0 %v441
  %583 = vmatpush.bf16.msra.mxu0 %v440
  %584 = vmatpush.bf16.msra.mxu0 %v439
  %585 = vmatpush.bf16.msra.mxu0 %v438
  %586 = vmatpush.bf16.msra.mxu0 %v437
  %587 = vmatmul.bf16.gmra.mxu0 %v157
  %v588 = vpop.f32.mrf.mxu0
  %v589 = vadd.f32 %v576, %v588
  %v590 = vpop.f32.mrf.mxu0
  %591 = vdwg.mxu0
  %v592 = vmax.f32 %v589, 0.0
  %v593 = vpack.c.bf16 %v592, %v592
  %v594 = vld [vmem:[%s3] sm:$0xf]
  %v595 = vld [vmem:[%s3 + $0x4] sm:$0xf]
  %v596 = vld [vmem:[%s3 + $0x8] sm:$0xf]
  %v597 = vld [vmem:[%s3 + $0xc] sm:$0xf]
  %v598 = vld [vmem:[%s3 + $0x10] sm:$0xf]
  %v599 = vld [vmem:[%s3 + $0x14] sm:$0xf]
  %v600 = vld [vmem:[%s3 + $0x18] sm:$0xf]
  %v601 = vld [vmem:[%s3 + $0x1c] sm:$0xf]
  %v602 = vld [vmem:[%s3 + $0x20] sm:$0xf]
  %v603 = vld [vmem:[%s3 + $0x24] sm:$0xf]
  %v604 = vld [vmem:[%s3 + $0x28] sm:$0xf]
  %v605 = vld [vmem:[%s3 + $0x2c] sm:$0xf]
  %v606 = vld [vmem:[%s3 + $0x30] sm:$0xf]
  %v607 = vld [vmem:[%s3 + $0x34] sm:$0xf]
  %v608 = vld [vmem:[%s3 + $0x38] sm:$0xf]
  %v609 = vld [vmem:[%s3 + $0x3c] sm:$0xf]
  %v610 = vld [vmem:[%s4] sm:$0x1]
  %v612 = vperm.slane %v610, 0
  %v630 = vunpack.c.l.b16 %v594
  %v631 = vunpack.c.l.b16 %v595
  %v632 = vunpack.c.l.b16 %v596
  %v633 = vunpack.c.l.b16 %v597
  %v634 = vunpack.c.l.b16 %v598
  %v635 = vunpack.c.l.b16 %v599
  %v636 = vunpack.c.l.b16 %v600
  %v637 = vunpack.c.l.b16 %v601
  %v638 = vunpack.c.l.b16 %v602
  %v639 = vunpack.c.l.b16 %v603
  %v640 = vunpack.c.l.b16 %v604
  %v641 = vunpack.c.l.b16 %v605
  %v642 = vunpack.c.l.b16 %v606
  %v643 = vunpack.c.l.b16 %v607
  %v644 = vunpack.c.l.b16 %v608
  %v645 = vunpack.c.l.b16 %v609
  %v646 = vpack.c.b16 %v631, %v630
  %v647 = vpack.c.b16 %v633, %v632
  %v648 = vpack.c.b16 %v635, %v634
  %v649 = vpack.c.b16 %v637, %v636
  %v650 = vpack.c.b16 %v639, %v638
  %v651 = vpack.c.b16 %v641, %v640
  %v652 = vpack.c.b16 %v643, %v642
  %v653 = vpack.c.b16 %v645, %v644
  %662 = vmatpush.bf16.msra.mxu0 %v653
  %663 = vmatpush.bf16.msra.mxu0 %v652
  %664 = vmatpush.bf16.msra.mxu0 %v651
  %665 = vmatpush.bf16.msra.mxu0 %v650
  %666 = vmatpush.bf16.msra.mxu0 %v649
  %667 = vmatpush.bf16.msra.mxu0 %v648
  %668 = vmatpush.bf16.msra.mxu0 %v647
  %669 = vmatpush.bf16.msra.mxu0 %v646
  %670 = vmatmul.bf16.gmra.mxu0 %v593
  %v671 = vpop.f32.mrf.mxu0
  %v672 = vadd.f32 %v612, %v671
  %v673 = vpop.f32.mrf.mxu0
  %674 = vdwg.mxu0
  %675 = vmax.xlane.f32.xlu0 %v672
  %v676 = vpop.xlane.xlu0 %675
  %v677 = vsub.f32 %v672, %v676
  %v678 = vmul.f32 %v677, 1.442695
  %v679 = vpow.pop %v678
  %680 = vadd.xlane.f32.xlu0 %v679
  %v681 = vpop.xlane.xlu0 %680
  %v682 = vrcp.pop %v681
  %v683 = vmul.f32 %v679, %v682
  %684 = vst [vmem:[%s5] sm:$0xff] %v683
  // Predicated region
  $region22: #{mlp_forward.1} parent=0 // pred_check
    _
  $region23: #{mlp_forward.1} parent=0 // pred_check_branch
    %686 = sbr.rel (0) target = $region25
  $region24: #{mlp_forward.1} parent=0 // pred_region
    _
  $region25: #{mlp_forward.1} parent=0 // pred_fallthru
    _
  // Predicated region
  $region26: #{mlp_forward.1} parent=0 // pred_check
    _
  $region27: #{mlp_forward.1} parent=0 // pred_check_branch
    %688 = sbr.rel (0) target = $region29
  $region28: #{mlp_forward.1} parent=0 // pred_region
    _
  $region29: #{mlp_forward.1} parent=0 // pred_fallthru
    _

</llo_original>
